<compile_context>
chip_gen: v5e
topology: v5e:2x2
jax: 0.10.0
libtpu: 0.0.40
codegen_flags: <defaults>
</compile_context>

<pallas_src>
import jax
import jax.numpy as jnp
from jax.experimental import pallas as pl
from jax.experimental.pallas import tpu as pltpu


def _mlp_policy_kernel(xT_ref, w1T_ref, w2T_ref, w3T_ref, bias_ref, oT_ref):
    # Shapes (lane-dense): xT [F_in, bm]; wkT [F_out, F_in]; oT [output_size, bm].
    H = w1T_ref.shape[0]          # hidden_size
    O = w3T_ref.shape[0]          # output_size

    x = xT_ref[...]               # [F_in, bm] f32

    bias = bias_ref[...]          # [max(H, O), 3]
    b1 = bias[:H, 0:1]            # [H, 1] -> broadcasts over lanes (batch)
    b2 = bias[:H, 1:2]
    b3 = bias[:O, 2:3]

    # fc1 + ReLU
    h1 = jnp.dot(w1T_ref[...], x, preferred_element_type=jnp.float32) + b1
    h1 = jnp.maximum(h1, 0.0)

    # fc2 + ReLU
    h2 = jnp.dot(w2T_ref[...], h1, preferred_element_type=jnp.float32) + b2
    h2 = jnp.maximum(h2, 0.0)

    # fc3 (logits), [output_size, bm]
    logits = jnp.dot(w3T_ref[...], h2, preferred_element_type=jnp.float32) + b3

    # Numerically-stable softmax along the feature (sublane) axis.
    m = jnp.max(logits, axis=0, keepdims=True)
    e = jnp.exp(logits - m)
    denom = jnp.sum(e, axis=0, keepdims=True)
    inv = pl.reciprocal(denom, approx=True)      # EUP vrcp (free slot)
    inv = inv * (2.0 - denom * inv)              # one Newton step -> ~f32 accuracy
    oT_ref[...] = (e * inv).astype(oT_ref.dtype)


def _default_block_batch(B):
    """Pick a lane-dense batch tile: multiple of 128 that divides B, bounded for VMEM,
    preferring >=2 grid steps so the 'parallel' axis can shard across TensorCores."""
    candidates = [bm for bm in (2048, 1024, 512, 256, 128) if B % bm == 0]
    for bm in candidates:
        if B // bm >= 2:
            return bm
    if candidates:
        return candidates[0]
    return B  # small / irregular batch: single whole-batch tile


def simple_policy_network(x, params, *, block_batch=None):
    """x: [B, input_size] float32. params: dict of w1,b1,w2,b2,w3,b3 (torch Linear layout)."""
    B, input_size = x.shape
    w1, b1 = params["w1"], params["b1"]
    w2, b2 = params["w2"], params["b2"]
    w3, b3 = params["w3"], params["b3"]
    hidden_size = w1.shape[1]
    output_size = w3.shape[1]

    bm = _default_block_batch(B) if block_batch is None else block_batch
    assert B % bm == 0, f"block_batch={bm} must divide batch={B}"
    assert bm == B or bm % 128 == 0, (
        "block_batch must equal the batch size or be a multiple of 128 (lane width)")

    # Lane-dense plumbing (host-side layout only, no extra compute in the kernel):
    xT = x.T                                  # [input_size, B]
    w1T, w2T, w3T = w1.T, w2.T, w3.T          # [F_out, F_in]

    # Pack the three bias vectors into one tiny array -> a single DMA stream.
    max_dim = max(hidden_size, output_size)
    bias_pack = jnp.zeros((max_dim, 3), jnp.float32)
    bias_pack = bias_pack.at[:hidden_size, 0].set(b1)
    bias_pack = bias_pack.at[:hidden_size, 1].set(b2)
    bias_pack = bias_pack.at[:output_size, 2].set(b3)

    # Weights / biases are small -> full-array blocks, resident across the batch grid.
    full = lambda a: pl.BlockSpec(a.shape, lambda i: (0,) * a.ndim)

    outT = pl.pallas_call(
        _mlp_policy_kernel,
        out_shape=jax.ShapeDtypeStruct((output_size, B), jnp.float32),
        grid_spec=pltpu.PrefetchScalarGridSpec(
            num_scalar_prefetch=0,
            grid=(B // bm,),
            in_specs=[
                pl.BlockSpec((input_size, bm), lambda i: (0, i)),   # x^T tile over batch (lanes)
                full(w1T), full(w2T), full(w3T), full(bias_pack),
            ],
            out_specs=pl.BlockSpec((output_size, bm), lambda i: (0, i)),
        ),
        compiler_params=pltpu.CompilerParams(
            dimension_semantics=("parallel",)),
    )(xT, w1T, w2T, w3T, bias_pack)

    return outT.T                              # back to [B, output_size]


def init_params(key, input_size, hidden_size, output_size):
    """Deterministic init mimicking torch.nn.Linear's U(-1/sqrt(fan_in), 1/sqrt(fan_in))."""
    def linear(k, fan_in, fan_out):
        kw, kb = jax.random.split(k)
        bound = 1.0 / jnp.sqrt(fan_in)
        w = jax.random.uniform(kw, (fan_in, fan_out), jnp.float32, -bound, bound)
        b = jax.random.uniform(kb, (fan_out,), jnp.float32, -bound, bound)
        return w, b

    k1, k2, k3 = jax.random.split(key, 3)
    w1, b1 = linear(k1, input_size, hidden_size)
    w2, b2 = linear(k2, hidden_size, hidden_size)
    w3, b3 = linear(k3, hidden_size, output_size)
    return {"w1": w1, "b1": b1, "w2": w2, "b2": b2, "w3": w3, "b3": b3}


def _reference(x, p):
    h1 = jax.nn.relu(x @ p["w1"] + p["b1"])
    h2 = jax.nn.relu(h1 @ p["w2"] + p["b2"])
    return jax.nn.softmax(h2 @ p["w3"] + p["b3"], axis=-1)


if __name__ == "__main__":
    input_size, hidden_size, output_size = 16, 32, 8

    key = jax.random.PRNGKey(0)
    k_params, k_x1, k_x2 = jax.random.split(key, 3)
    params = init_params(k_params, input_size, hidden_size, output_size)

    # Small batch: single whole-batch tile (bm == B).
    batch = 8
    x = jax.random.normal(k_x1, (batch, input_size), jnp.float32)
    out = jax.block_until_ready(simple_policy_network(x, params))
    expected = _reference(x, params)
    assert out.shape == (batch, output_size)
    assert jnp.allclose(out, expected, atol=1e-5, rtol=1e-5)
    assert jnp.allclose(jnp.sum(out, axis=-1), 1.0, atol=1e-5)

    # Larger batch: exercises the lane-dense tiled path (bm=128, grid=(2,), parallel).
    batch2 = 256
    x2 = jax.random.normal(k_x2, (batch2, input_size), jnp.float32)
    out2 = jax.block_until_ready(simple_policy_network(x2, params))
    expected2 = _reference(x2, params)
    assert out2.shape == (batch2, output_size)
    assert jnp.allclose(out2, expected2, atol=1e-5, rtol=1e-5)
    assert jnp.allclose(jnp.sum(out2, axis=-1), 1.0, atol=1e-5)

    print("KERNEL_OK")
</pallas_src>

<mosaic_0001>
module attributes {stable_mosaic.version = 11 : i64} {
  func.func @_mlp_policy_kernel(%arg0: i32, %arg1: memref<16x8xf32, #tpu.memory_space<vmem>>, %arg2: memref<32x16xf32, #tpu.memory_space<vmem>>, %arg3: memref<32x32xf32, #tpu.memory_space<vmem>>, %arg4: memref<8x32xf32, #tpu.memory_space<vmem>>, %arg5: memref<32x3xf32, #tpu.memory_space<vmem>>, %arg6: memref<8x8xf32, #tpu.memory_space<vmem>>) attributes {dimension_semantics = [#tpu.dimension_semantics<parallel>], iteration_bounds = array<i64: 1>, scalar_prefetch = 0 : i64, scratch_operands = 0 : i64, tpu.core_type = #tpu.core_type<tc>, window_params = [{transform_indices = @transform_0, window_bounds = array<i64: 16, 8>}, {pipeline_mode = #tpu.pipeline_mode<synchronous>, transform_indices = @transform_1, window_bounds = array<i64: 32, 16>}, {pipeline_mode = #tpu.pipeline_mode<synchronous>, transform_indices = @transform_2, window_bounds = array<i64: 32, 32>}, {pipeline_mode = #tpu.pipeline_mode<synchronous>, transform_indices = @transform_3, window_bounds = array<i64: 8, 32>}, {pipeline_mode = #tpu.pipeline_mode<synchronous>, transform_indices = @transform_4, window_bounds = array<i64: 32, 3>}, {transform_indices = @transform_5, window_bounds = array<i64: 8, 8>}]} {
    %c0 = arith.constant 0 : index
    %c0_0 = arith.constant 0 : index
    %0 = vector.load %arg1[%c0, %c0_0] : memref<16x8xf32, #tpu.memory_space<vmem>>, vector<16x8xf32>
    %c0_1 = arith.constant 0 : index
    %c0_2 = arith.constant 0 : index
    %1 = vector.load %arg5[%c0_1, %c0_2] : memref<32x3xf32, #tpu.memory_space<vmem>>, vector<32x3xf32>
    %2 = vector.extract_strided_slice %1 {offsets = [0, 0], sizes = [32, 1], strides = [1, 1]} : vector<32x3xf32> to vector<32x1xf32>
    %3 = vector.extract_strided_slice %1 {offsets = [0, 1], sizes = [32, 1], strides = [1, 1]} : vector<32x3xf32> to vector<32x1xf32>
    %4 = vector.extract_strided_slice %1 {offsets = [0, 2], sizes = [8, 1], strides = [1, 1]} : vector<32x3xf32> to vector<8x1xf32>
    %c0_3 = arith.constant 0 : index
    %c0_4 = arith.constant 0 : index
    %5 = vector.load %arg2[%c0_3, %c0_4] : memref<32x16xf32, #tpu.memory_space<vmem>>, vector<32x16xf32>
    %cst = arith.constant dense<0.000000e+00> : vector<32x8xf32>
    %6 = tpu.matmul %5, %0, %cst {dimension_numbers = #tpu.dot_dimension_numbers<[1], [0], [0], [1], [0, 0, 1, 1], [], []>} : vector<32x16xf32>, vector<16x8xf32>, vector<32x8xf32> -> vector<32x8xf32>
    %7 = vector.broadcast %2 : vector<32x1xf32> to vector<32x8xf32>
    %8 = arith.addf %6, %7 : vector<32x8xf32>
    %cst_5 = arith.constant 0.000000e+00 : f32
    %9 = vector.broadcast %cst_5 : f32 to vector<32x8xf32>
    %10 = arith.maximumf %8, %9 : vector<32x8xf32>
    %c0_6 = arith.constant 0 : index
    %c0_7 = arith.constant 0 : index
    %11 = vector.load %arg3[%c0_6, %c0_7] : memref<32x32xf32, #tpu.memory_space<vmem>>, vector<32x32xf32>
    %cst_8 = arith.constant dense<0.000000e+00> : vector<32x8xf32>
    %12 = tpu.matmul %11, %10, %cst_8 {dimension_numbers = #tpu.dot_dimension_numbers<[1], [0], [0], [1], [0, 0, 1, 1], [], []>} : vector<32x32xf32>, vector<32x8xf32>, vector<32x8xf32> -> vector<32x8xf32>
    %13 = vector.broadcast %3 : vector<32x1xf32> to vector<32x8xf32>
    %14 = arith.addf %12, %13 : vector<32x8xf32>
    %cst_9 = arith.constant 0.000000e+00 : f32
    %15 = vector.broadcast %cst_9 : f32 to vector<32x8xf32>
    %16 = arith.maximumf %14, %15 : vector<32x8xf32>
    %c0_10 = arith.constant 0 : index
    %c0_11 = arith.constant 0 : index
    %17 = vector.load %arg4[%c0_10, %c0_11] : memref<8x32xf32, #tpu.memory_space<vmem>>, vector<8x32xf32>
    %cst_12 = arith.constant dense<0.000000e+00> : vector<8x8xf32>
    %18 = tpu.matmul %17, %16, %cst_12 {dimension_numbers = #tpu.dot_dimension_numbers<[1], [0], [0], [1], [0, 0, 1, 1], [], []>} : vector<8x32xf32>, vector<32x8xf32>, vector<8x8xf32> -> vector<8x8xf32>
    %19 = vector.broadcast %4 : vector<8x1xf32> to vector<8x8xf32>
    %20 = arith.addf %18, %19 : vector<8x8xf32>
    %cst_13 = arith.constant dense<0xFF800000> : vector<8xf32>
    %21 = vector.multi_reduction <maximumf>, %20, %cst_13 [0] : vector<8x8xf32> to vector<8xf32>
    %22 = vector.shape_cast %21 : vector<8xf32> to vector<1x8xf32>
    %23 = vector.broadcast %22 : vector<1x8xf32> to vector<8x8xf32>
    %24 = arith.subf %20, %23 : vector<8x8xf32>
    %25 = math.exp %24 : vector<8x8xf32>
    %cst_14 = arith.constant dense<0.000000e+00> : vector<8xf32>
    %26 = vector.multi_reduction <add>, %25, %cst_14 [0] : vector<8x8xf32> to vector<8xf32>
    %27 = vector.shape_cast %26 : vector<8xf32> to vector<1x8xf32>
    %28 = tpu.reciprocal %27 {approx = true} : vector<1x8xf32> -> vector<1x8xf32>
    %29 = arith.mulf %27, %28 : vector<1x8xf32>
    %cst_15 = arith.constant 2.000000e+00 : f32
    %30 = vector.broadcast %cst_15 : f32 to vector<1x8xf32>
    %31 = arith.subf %30, %29 : vector<1x8xf32>
    %32 = arith.mulf %28, %31 : vector<1x8xf32>
    %33 = vector.broadcast %32 : vector<1x8xf32> to vector<8x8xf32>
    %34 = arith.mulf %25, %33 : vector<8x8xf32>
    %c0_16 = arith.constant 0 : index
    %c0_17 = arith.constant 0 : index
    %35 = vector.load %arg6[%c0_16, %c0_17] : memref<8x8xf32, #tpu.memory_space<vmem>>, vector<8x8xf32>
    tpu.vector_store %arg6[%c0_16, %c0_17], %34 {strides = array<i32>} : memref<8x8xf32, #tpu.memory_space<vmem>>, vector<8x8xf32>,
    return
  }
  func.func @transform_0(%arg0: i32) -> (i32, i32) {
    %c0_i32 = arith.constant 0 : i32
    %c0_i32_0 = arith.constant 0 : i32
    return %c0_i32, %arg0 : i32, i32
  }
  func.func @transform_1(%arg0: i32) -> (i32, i32) {
    %c0_i32 = arith.constant 0 : i32
    %c0_i32_0 = arith.constant 0 : i32
    %c0_i32_1 = arith.constant 0 : i32
    return %c0_i32, %c0_i32_0 : i32, i32
  }
  func.func @transform_2(%arg0: i32) -> (i32, i32) {
    %c0_i32 = arith.constant 0 : i32
    %c0_i32_0 = arith.constant 0 : i32
    %c0_i32_1 = arith.constant 0 : i32
    return %c0_i32, %c0_i32_0 : i32, i32
  }
  func.func @transform_3(%arg0: i32) -> (i32, i32) {
    %c0_i32 = arith.constant 0 : i32
    %c0_i32_0 = arith.constant 0 : i32
    %c0_i32_1 = arith.constant 0 : i32
    return %c0_i32, %c0_i32_0 : i32, i32
  }
  func.func @transform_4(%arg0: i32) -> (i32, i32) {
    %c0_i32 = arith.constant 0 : i32
    %c0_i32_0 = arith.constant 0 : i32
    %c0_i32_1 = arith.constant 0 : i32
    return %c0_i32, %c0_i32_0 : i32, i32
  }
  func.func @transform_5(%arg0: i32) -> (i32, i32) {
    %c0_i32 = arith.constant 0 : i32
    %c0_i32_0 = arith.constant 0 : i32
    return %c0_i32, %arg0 : i32, i32
  }
}

</mosaic_0001>

<llo_original>
// kernel: tpu_custom_call.1
$region0: #{tpu_custom_call.1}
  #allocation0 [shape = 'u32[]', space=smem, size = 0x4, offset = 0x4, fixed_abs, tag = 'smem constant byte address 0x4 - core index']
  #allocation1 [shape = 'u32[72,128]{1,0:T(1,128)}', space=vmem, size = 0x9000, scoped, tag = 'internal scratch']
  %s0 = inlined_call_operand.vmem [shape: f32[16,8], index: 0, kind: input, shape index: {}]
  %s1 = inlined_call_operand.vmem [shape: f32[32,16], index: 1, kind: input, shape index: {}]
  %s2 = inlined_call_operand.vmem [shape: f32[32,32], index: 2, kind: input, shape index: {}]
  %s3 = inlined_call_operand.vmem [shape: f32[8,32], index: 3, kind: input, shape index: {}]
  %s4 = inlined_call_operand.vmem [shape: f32[32,3], index: 4, kind: input, shape index: {}]
  %s5 = inlined_call_operand.hbm [shape: f32[8,8], index: 5, kind: output, shape index: {}]
  %s6 = sld [smem:[#allocation0]]
  $region30: #{tpu_custom_call.1} parent=0
    _
  %s8 = ssub.s32 1, %s6
  %s9 = scalar_select 0, %s8, %s6
  $region1: #{tpu_custom_call.1} parent=0
    #allocation2 [shape = 'u8[4096]{0}', space=vmem, size = 0x1000, scoped, tag = 'output window, operand 0, single buffered']
    #allocation3 [shape = 's32[1]{0}', space=sflag, size = 0x4, scoped, tag = 'scoped memory for tpu_custom_call.1']
    %10 = vsyncpa [#allocation3], 0
    // Predicated region
    $region2: #{tpu_custom_call.1} parent=1 // pred_check
      _
    $region3: #{tpu_custom_call.1} parent=1 // pred_check_branch
      %12 = sbr.rel (0) target = $region5
    $region4: #{tpu_custom_call.1} parent=1 // pred_region
      _
    $region5: #{tpu_custom_call.1} parent=1 // pred_fallthru
      _
    // Predicated region
    $region6: #{tpu_custom_call.1} parent=1 // pred_check
      _
    $region7: #{tpu_custom_call.1} parent=1 // pred_check_branch
      %14 = sbr.rel (0) target = $region9
    $region8: #{tpu_custom_call.1} parent=1 // pred_region
      _
    $region9: #{tpu_custom_call.1} parent=1 // pred_fallthru
      _
    // Predicated region
    $region10: #{tpu_custom_call.1} parent=1 // pred_check
      _
    $region11: #{tpu_custom_call.1} parent=1 // pred_check_branch
      %16 = sbr.rel (0) target = $region13
    $region12: #{tpu_custom_call.1} parent=1 // pred_region
      _
    $region13: #{tpu_custom_call.1} parent=1 // pred_fallthru
      _
    // Predicated region
    $region14: #{tpu_custom_call.1} parent=1 // pred_check
      _
    $region15: #{tpu_custom_call.1} parent=1 // pred_check_branch
      %18 = sbr.rel (0) target = $region17
    $region16: #{tpu_custom_call.1} parent=1 // pred_region
      _
    $region17: #{tpu_custom_call.1} parent=1 // pred_fallthru
      _
    // Predicated region
    $region18: #{tpu_custom_call.1} parent=1 // pred_check
      _
    $region19: #{tpu_custom_call.1} parent=1 // pred_check_branch
      %20 = sbr.rel (0) target = $region21
    $region20: #{tpu_custom_call.1} parent=1 // pred_region
      _
    $region21: #{tpu_custom_call.1} parent=1 // pred_fallthru
      _
    %v21 = vld [vmem:[%s0] sm:$0xff]
    %v22 = vld [vmem:[%s0 + $0x8] sm:$0xff]
    %v23 = vld [vmem:[%s4] sm:$0xff]
    %v24 = vld [vmem:[%s4 + $0x8] sm:$0xff]
    %v25 = vld [vmem:[%s4 + $0x10] sm:$0xff]
    %v26 = vld [vmem:[%s4 + $0x18] sm:$0xff]
    %v27 = vld [vmem:[%s1] sm:$0xff]
    %v28 = vld [vmem:[%s1 + $0x8] sm:$0xff]
    %v29 = vld [vmem:[%s1 + $0x10] sm:$0xff]
    %v30 = vld [vmem:[%s1 + $0x18] sm:$0xff]
    %32 = vset.pattern.permute.xlu0 0
    %33 = vperm.xlu0 %32, %v23
    %v34 = vpop.permute.xlu0 %33
    %37 = vset.pattern.permute.xlu0 0
    %38 = vperm.xlu0 %37, %v24
    %v39 = vpop.permute.xlu0 %38
    %42 = vset.pattern.permute.xlu0 0
    %43 = vperm.xlu0 %42, %v25
    %v44 = vpop.permute.xlu0 %43
    %47 = vset.pattern.permute.xlu0 0
    %48 = vperm.xlu0 %47, %v26
    %v49 = vpop.permute.xlu0 %48
    %vm51 = vcmask 130048
    %v53 = vsel %vm51, %v27, 0
    %v56 = vsel %vm51, %v28, 0
    %v59 = vsel %vm51, %v29, 0
    %v62 = vsel %vm51, %v30, 0
    %64 = vmatpush.msra.mxu0 0.0
    %65 = vmatpush.msra.mxu0 0.0
    %66 = vmatpush.msra.mxu0 0.0
    %67 = vmatpush.msra.mxu0 0.0
    %68 = vmatpush.msra.mxu0 0.0
    %69 = vmatpush.msra.mxu0 0.0
    %70 = vmatpush.msra.mxu0 0.0
    %71 = vmatpush.msra.mxu0 0.0
    %72 = vmatpush.msra.mxu0 0.0
    %73 = vmatpush.msra.mxu0 0.0
    %74 = vmatpush.msra.mxu0 0.0
    %75 = vmatpush.msra.mxu0 0.0
    %76 = vmatpush.msra.mxu0 0.0
    %77 = vmatpush.msra.mxu0 0.0
    %78 = vmatpush.msra.mxu0 %v22
    %79 = vmatpush.msra.mxu0 %v21
    %80 = vmatmul.f32.gmra.mxu0 %v53
    %v81 = vpop.f32.mrf.mxu0
    %v82 = vadd.f32 %v34, %v81
    %83 = vmatmul.f32.gmra.mxu0 %v56
    %v84 = vpop.f32.mrf.mxu0
    %v85 = vadd.f32 %v39, %v84
    %86 = vmatmul.f32.gmra.mxu0 %v59
    %v87 = vpop.f32.mrf.mxu0
    %v88 = vadd.f32 %v44, %v87
    %89 = vmatmul.f32.gmra.mxu0 %v62
    %v90 = vpop.f32.mrf.mxu0
    %v91 = vadd.f32 %v49, %v90
    %92 = vdwg.mxu0
    %v93 = vmax.f32 %v82, 0.0
    %v94 = vmax.f32 %v85, 0.0
    %v95 = vmax.f32 %v88, 0.0
    %v96 = vmax.f32 %v91, 0.0
    %v97 = vld [vmem:[%s2] sm:$0xff]
    %v98 = vld [vmem:[%s2 + $0x8] sm:$0xff]
    %v99 = vld [vmem:[%s2 + $0x10] sm:$0xff]
    %v100 = vld [vmem:[%s2 + $0x18] sm:$0xff]
    %101 = vset.pattern.permute.xlu0 1
    %102 = vperm.xlu0 %101, %v23
    %v103 = vpop.permute.xlu0 %102
    %105 = vset.pattern.permute.xlu0 1
    %106 = vperm.xlu0 %105, %v24
    %v107 = vpop.permute.xlu0 %106
    %109 = vset.pattern.permute.xlu0 1
    %110 = vperm.xlu0 %109, %v25
    %v111 = vpop.permute.xlu0 %110
    %113 = vset.pattern.permute.xlu0 1
    %114 = vperm.xlu0 %113, %v26
    %v115 = vpop.permute.xlu0 %114
    %vm117 = vcmask 261120
    %v119 = vsel %vm117, %v97, 0
    %v122 = vsel %vm117, %v98, 0
    %v125 = vsel %vm117, %v99, 0
    %v128 = vsel %vm117, %v100, 0
    %130 = vmatpush.msra.mxu0 0.0
    %131 = vmatpush.msra.mxu0 0.0
    %132 = vmatpush.msra.mxu0 0.0
    %133 = vmatpush.msra.mxu0 0.0
    %134 = vmatpush.msra.mxu0 0.0
    %135 = vmatpush.msra.mxu0 0.0
    %136 = vmatpush.msra.mxu0 0.0
    %137 = vmatpush.msra.mxu0 0.0
    %138 = vmatpush.msra.mxu0 0.0
    %139 = vmatpush.msra.mxu0 0.0
    %140 = vmatpush.msra.mxu0 0.0
    %141 = vmatpush.msra.mxu0 0.0
    %142 = vmatpush.msra.mxu0 %v96
    %143 = vmatpush.msra.mxu0 %v95
    %144 = vmatpush.msra.mxu0 %v94
    %145 = vmatpush.msra.mxu0 %v93
    %146 = vmatmul.f32.gmra.mxu0 %v119
    %v147 = vpop.f32.mrf.mxu0
    %v148 = vadd.f32 %v103, %v147
    %149 = vmatmul.f32.gmra.mxu0 %v122
    %v150 = vpop.f32.mrf.mxu0
    %v151 = vadd.f32 %v107, %v150
    %152 = vmatmul.f32.gmra.mxu0 %v125
    %v153 = vpop.f32.mrf.mxu0
    %v154 = vadd.f32 %v111, %v153
    %155 = vmatmul.f32.gmra.mxu0 %v128
    %v156 = vpop.f32.mrf.mxu0
    %v157 = vadd.f32 %v115, %v156
    %158 = vdwg.mxu0
    %v159 = vmax.f32 %v148, 0.0
    %v160 = vmax.f32 %v151, 0.0
    %v161 = vmax.f32 %v154, 0.0
    %v162 = vmax.f32 %v157, 0.0
    %v163 = vld [vmem:[%s3] sm:$0xff]
    %164 = vset.pattern.permute.xlu0 2
    %165 = vperm.xlu0 %164, %v23
    %v166 = vpop.permute.xlu0 %165
    %v169 = vsel %vm117, %v163, 0
    %171 = vmatpush.msra.mxu0 0.0
    %172 = vmatpush.msra.mxu0 0.0
    %173 = vmatpush.msra.mxu0 0.0
    %174 = vmatpush.msra.mxu0 0.0
    %175 = vmatpush.msra.mxu0 0.0
    %176 = vmatpush.msra.mxu0 0.0
    %177 = vmatpush.msra.mxu0 0.0
    %178 = vmatpush.msra.mxu0 0.0
    %179 = vmatpush.msra.mxu0 0.0
    %180 = vmatpush.msra.mxu0 0.0
    %181 = vmatpush.msra.mxu0 0.0
    %182 = vmatpush.msra.mxu0 0.0
    %183 = vmatpush.msra.mxu0 %v162
    %184 = vmatpush.msra.mxu0 %v161
    %185 = vmatpush.msra.mxu0 %v160
    %186 = vmatpush.msra.mxu0 %v159
    %187 = vmatmul.f32.gmra.mxu0 %v169
    %v188 = vpop.f32.mrf.mxu0
    %v189 = vadd.f32 %v166, %v188
    %190 = vdwg.mxu0
    %vm191 = vcmask 64512
    %v192 = vsel %vm191, %v189, -inf
    %v193 = vrot.slane %v192, 4
    %v194 = vmax.f32 %v192, %v193
    %v195 = vrot.slane %v194, 2
    %v196 = vmax.f32 %v194, %v195
    %v197 = vrot.slane %v196, 1
    %v198 = vmax.f32 %v196, %v197
    %v199 = vsub.f32 %v189, %v198
    %v200 = vmul.f32 %v199, 1.442695
    %v201 = vpow.pop %v200
    %v202 = vsel %vm191, %v201, 0.0
    %v203 = vrot.slane %v202, 4
    %v204 = vadd.f32 %v202, %v203
    %v205 = vrot.slane %v204, 2
    %v206 = vadd.f32 %v204, %v205
    %v207 = vrot.slane %v206, 1
    %v208 = vadd.f32 %v206, %v207
    %v209 = vrcp.pop %v208
    %v210 = vmul.f32 %v208, %v209
    %v211 = vsub.f32 2.0, %v210
    %v212 = vmul.f32 %v209, %v211
    %v213 = vmul.f32 %v201, %v212
    %214 = vst.msk [vmem:[#allocation2] sm:$0xff] %vm191, %v213
    // Predicated region
    $region22: #{tpu_custom_call.1} parent=1 // pred_check
      _
    $region23: #{tpu_custom_call.1} parent=1 // pred_check_branch
      %216 = sbr.rel (0) target = $region25
    $region24: #{tpu_custom_call.1} parent=1 // pred_region
      %218 = vsyncadd [#allocation3], 0
      %s220 = sshll.u32 [#allocation2], 4
      %s221 = int_to_ptr.vmem [resolvable:$true] %s220
      %s222 = sshll.u32 %s5, 4
      %s223 = int_to_ptr.hbm [resolvable:$true] %s222
      %225 = dma.vmem_to_hbm [thread:$0]  %s221, 128, %s223, [#allocation3]
    $region25: #{tpu_custom_call.1} parent=1 // pred_fallthru
      _
    // Predicated region
    $region26: #{tpu_custom_call.1} parent=1 // pred_check
      _
    $region27: #{tpu_custom_call.1} parent=1 // pred_check_branch
      %227 = sbr.rel (0) target = $region29
    $region28: #{tpu_custom_call.1} parent=1 // pred_region
      %229 = dma.done [#allocation3], 128
    $region29: #{tpu_custom_call.1} parent=1 // pred_fallthru
      _
    %230 = vsyncpa [#allocation3], 1

</llo_original>
